<compile_context>
chip_gen: v5e
topology: v5e:2x2
jax: 0.10.0
libtpu: 0.0.40
codegen_flags: <defaults>
</compile_context>

<pallas_src>
import jax
import jax.numpy as jnp
from jax.experimental import pallas as pl
from jax.experimental.pallas import tpu as pltpu


# --------------------------------------------------------------------------
# Kernel
# --------------------------------------------------------------------------
def _exp_mask_kernel(x_ref, m_ref, o_ref):
    # x_ref: (TM, Sk) tile, m_ref: (1, Sk) mask row (resident across row
    # tiles of a batch).  Upcast is fused into the load; exp runs in f32 on
    # the EUP; downcast (if any) happens at the store.
    x = x_ref[...].astype(jnp.float32)
    m = m_ref[...].astype(jnp.float32)
    o_ref[...] = jnp.exp(x + m).astype(o_ref.dtype)


# --------------------------------------------------------------------------
# Tiling helpers
# --------------------------------------------------------------------------
def _cdiv(a, b):
    return -(-a // b)


def _round_down(x, m):
    return max(m, (x // m) * m)


def _round_up(x, m):
    return _cdiv(x, m) * m


def _vmem_capacity_bytes():
    """Physical VMEM of the current generation; conservative 64 MiB fallback."""
    try:
        return int(pltpu.get_tpu_info().vmem_capacity_bytes)
    except Exception:
        return 64 << 20  # v7x-sized fallback


def _choose_row_tile(batch, rows, sk, in_bytes, out_bytes, vmem_cap):
    """Row-tile size TM for the [B, rows, Sk] view.

    * BYTE-sized: double-buffered in+out tiles fit a generation-aware VMEM
      budget (v7x: ~0.7 * 64 MiB; 128 MiB parts: capped at 64 MiB).
    * Multiple of 16 when a sub-32-bit dtype is involved, else 8.
    * Shrunk (only as far as a ~2 MiB-per-tile floor allows) so that
      B * num_row_tiles >= 8 parallel grid blocks exist for megacore.
    """
    mult = 16 if min(in_bytes, out_bytes) < 4 else 8
    bytes_per_row = sk * (in_bytes + out_bytes)

    db_budget = min(int(vmem_cap * 0.7), 64 << 20)
    tm = _round_down(db_budget // (2 * bytes_per_row), mult)
    if tm >= rows:
        tm = rows  # full axis is always a legal block shape

    MIN_BLOCKS = 8  # enough parallel blocks to shard across 2 TCs and pipeline
    if batch * _cdiv(rows, tm) < MIN_BLOCKS:
        tm_split = _round_up(_cdiv(rows, _cdiv(MIN_BLOCKS, batch)), mult)
        # don't shrink below ~2 MiB of per-tile HBM traffic (per-step overhead
        # would start to dominate), unless the whole row axis is smaller.
        floor = min(_round_down((2 << 20) // max(bytes_per_row, 1), mult), rows)
        tm = min(tm, max(tm_split, floor))
    return max(1, tm)


# --------------------------------------------------------------------------
# Public wrapper (Exp_grad.forward)
# --------------------------------------------------------------------------
def exp_grad_forward(inputs, attention_mask=None, seq_op_in_fp32=False,
                     out_dtype=None):
    """JAX/Pallas equivalent of Exp_grad.forward.

    inputs:          [B, H, Sq, Sk]
    attention_mask:  additive mask broadcastable as [B or 1, 1, 1, Sk], or None
    out_dtype:       optional override of the store dtype (e.g. bf16 on v5e to
                     halve store bandwidth when the consumer tolerates it).

    NOTE: best performance requires Sk % 128 == 0 (lane-dense stores); other
    Sk values (and non-canonical mask shapes / no mask) fall back to the
    XLA-fused elementwise expression, which is already HBM-roofline bound.
    """
    inputs = jnp.asarray(inputs)
    B, H, Sq, Sk = inputs.shape
    rows = H * Sq

    # Output dtype matches the PyTorch module: fp32 when seq_op_in_fp32,
    # otherwise the promoted dtype of inputs (+ mask).
    if seq_op_in_fp32:
        natural_out = jnp.float32
    elif attention_mask is not None:
        natural_out = jnp.result_type(inputs.dtype,
                                      jnp.asarray(attention_mask).dtype)
    else:
        natural_out = inputs.dtype
    out_dtype = natural_out if out_dtype is None else jnp.dtype(out_dtype)

    # ---- no-mask path: XLA already fuses a bare exp to the HBM roofline;
    # a Pallas grid would only add per-step overhead.
    if attention_mask is None:
        x = inputs.astype(jnp.float32) if seq_op_in_fp32 else inputs
        return jnp.exp(x).astype(out_dtype)

    mask = jnp.asarray(attention_mask)
    canonical_mask = (
        mask.ndim == 4
        and mask.shape[1] == 1 and mask.shape[2] == 1
        and mask.shape[0] in (1, B) and mask.shape[3] in (1, Sk)
    )
    lane_dense = (Sk % 128 == 0)

    if not (canonical_mask and lane_dense):
        # Fallback: non-canonical mask shapes, or Sk not a multiple of 128
        # (non-lane-dense output tiles would force masked vst.msk stores and
        # lose most of the store bandwidth anyway).
        x, m = inputs, mask
        if seq_op_in_fp32:
            x, m = x.astype(jnp.float32), m.astype(jnp.float32)
        return jnp.exp(x + m).astype(out_dtype)

    # ---- Pallas path: [B, H*Sq, Sk] view, full lane-dense Sk per block,
    # row axis tiled by TM, mask row resident across row tiles of a batch.
    x2 = inputs.reshape(B, rows, Sk)
    m2 = jnp.broadcast_to(mask, (B, 1, 1, Sk)).reshape(B, 1, Sk)

    in_bytes = jnp.dtype(inputs.dtype).itemsize
    ot_bytes = jnp.dtype(out_dtype).itemsize
    vmem_cap = _vmem_capacity_bytes()
    tm = _choose_row_tile(B, rows, Sk, in_bytes, ot_bytes, vmem_cap)
    grid = (B, _cdiv(rows, tm))

    compiler_params = pltpu.CompilerParams(
        dimension_semantics=("parallel", "parallel"),
        vmem_limit_bytes=min(int(vmem_cap * 7 // 8), 96 << 20),
    )

    out = pl.pallas_call(
        _exp_mask_kernel,
        out_shape=jax.ShapeDtypeStruct((B, rows, Sk), out_dtype),
        grid=grid,
        in_specs=[
            # Leading batch dim squeezed (None) -> kernel sees 2-D (TM, Sk).
            pl.BlockSpec((None, tm, Sk), lambda b, m: (b, m, 0)),
            # Mask index_map is independent of the row-tile axis -> the tiny
            # (1, Sk) mask block stays resident across row tiles of a batch.
            pl.BlockSpec((None, 1, Sk), lambda b, m: (b, 0, 0)),
        ],
        out_specs=pl.BlockSpec((None, tm, Sk), lambda b, m: (b, m, 0)),
        compiler_params=compiler_params,
    )(x2, m2)

    return out.reshape(B, H, Sq, Sk)


# --------------------------------------------------------------------------
# Self-test
# --------------------------------------------------------------------------
if __name__ == "__main__":
    # Module has no learnable parameters (num_attention_heads unused in forward).
    # Sk = 128 so the Pallas path runs with lane-dense stores; shapes stay small.
    B, H, Sq, Sk = 2, 4, 16, 128
    key = jax.random.PRNGKey(0)
    k1, k2 = jax.random.split(key)
    inputs = jax.random.normal(k1, (B, H, Sq, Sk), dtype=jnp.float32)
    # typical additive attention mask: 0 for keep, large negative for masked
    mask_bits = jax.random.bernoulli(k2, p=0.8, shape=(B, 1, 1, Sk))
    attention_mask = jnp.where(mask_bits, 0.0, -1e4).astype(jnp.float32)

    # 1) masked Pallas path, f32
    out = jax.block_until_ready(exp_grad_forward(inputs, attention_mask))
    ref = jnp.exp(inputs + attention_mask)
    assert out.shape == (B, H, Sq, Sk) and out.dtype == jnp.float32
    assert jnp.allclose(out, ref, rtol=1e-5, atol=1e-6)

    # 2) seq_op_in_fp32 with bf16 inputs: upcast fused inside the kernel,
    #    output must be fp32 and match an explicit-f32 reference.
    inputs_bf16 = inputs.astype(jnp.bfloat16)
    mask_bf16 = attention_mask.astype(jnp.bfloat16)
    out_bf = jax.block_until_ready(
        exp_grad_forward(inputs_bf16, mask_bf16, seq_op_in_fp32=True)
    )
    ref_bf = jnp.exp(inputs_bf16.astype(jnp.float32)
                     + mask_bf16.astype(jnp.float32))
    assert out_bf.dtype == jnp.float32
    assert jnp.allclose(out_bf, ref_bf, rtol=1e-4, atol=1e-6)

    # 3) no-mask path (XLA-fused elementwise, by design)
    out_nm = jax.block_until_ready(exp_grad_forward(inputs, None))
    assert jnp.allclose(out_nm, jnp.exp(inputs), rtol=1e-5, atol=1e-6)

    # 4) Sk not a multiple of 128 -> documented fallback to the fused XLA path
    out_sm = jax.block_until_ready(
        exp_grad_forward(inputs[..., :16], attention_mask[..., :16])
    )
    assert jnp.allclose(out_sm, jnp.exp(inputs[..., :16] + attention_mask[..., :16]),
                        rtol=1e-5, atol=1e-6)

    print("KERNEL_OK")
</pallas_src>

<mosaic_0001>
module attributes {stable_mosaic.version = 11 : i64} {
  func.func @_exp_mask_kernel(%arg0: i32, %arg1: i32, %arg2: memref<1x64x128xf32, #tpu.memory_space<vmem>>, %arg3: memref<1x1x128xf32, #tpu.memory_space<vmem>>, %arg4: memref<1x64x128xf32, #tpu.memory_space<vmem>>) attributes {dimension_semantics = [#tpu.dimension_semantics<parallel>, #tpu.dimension_semantics<parallel>], iteration_bounds = array<i64: 2, 1>, scalar_prefetch = 0 : i64, scratch_operands = 0 : i64, tpu.core_type = #tpu.core_type<tc>, window_params = [{transform_indices = @transform_0, window_bounds = array<i64: 1, 64, 128>}, {transform_indices = @transform_1, window_bounds = array<i64: 1, 1, 128>}, {transform_indices = @transform_2, window_bounds = array<i64: 1, 64, 128>}]} {
    %c0 = arith.constant 0 : index
    %c0_0 = arith.constant 0 : index
    %c0_1 = arith.constant 0 : index
    %0 = vector.load %arg2[%c0, %c0_0, %c0_1] : memref<1x64x128xf32, #tpu.memory_space<vmem>>, vector<1x64x128xf32>
    %1 = vector.shape_cast %0 : vector<1x64x128xf32> to vector<64x128xf32>
    %c0_2 = arith.constant 0 : index
    %c0_3 = arith.constant 0 : index
    %c0_4 = arith.constant 0 : index
    %2 = vector.load %arg3[%c0_2, %c0_3, %c0_4] : memref<1x1x128xf32, #tpu.memory_space<vmem>>, vector<1x1x128xf32>
    %3 = vector.shape_cast %2 : vector<1x1x128xf32> to vector<1x128xf32>
    %4 = vector.broadcast %3 : vector<1x128xf32> to vector<64x128xf32>
    %5 = arith.addf %1, %4 : vector<64x128xf32>
    %6 = math.exp %5 : vector<64x128xf32>
    %c0_5 = arith.constant 0 : index
    %c0_6 = arith.constant 0 : index
    %c0_7 = arith.constant 0 : index
    %7 = vector.load %arg4[%c0_5, %c0_6, %c0_7] : memref<1x64x128xf32, #tpu.memory_space<vmem>>, vector<1x64x128xf32>
    %8 = vector.shape_cast %7 : vector<1x64x128xf32> to vector<64x128xf32>
    %9 = vector.shape_cast %6 : vector<64x128xf32> to vector<1x64x128xf32>
    tpu.vector_store %arg4[%c0_5, %c0_6, %c0_7], %9 {strides = array<i32>} : memref<1x64x128xf32, #tpu.memory_space<vmem>>, vector<1x64x128xf32>,
    return
  }
  func.func @transform_0(%arg0: i32, %arg1: i32) -> (i32, i32, i32) {
    %c0_i32 = arith.constant 0 : i32
    %c0_i32_0 = arith.constant 0 : i32
    return %arg0, %arg1, %c0_i32 : i32, i32, i32
  }
  func.func @transform_1(%arg0: i32, %arg1: i32) -> (i32, i32, i32) {
    %c0_i32 = arith.constant 0 : i32
    %c0_i32_0 = arith.constant 0 : i32
    %c0_i32_1 = arith.constant 0 : i32
    return %arg0, %c0_i32, %c0_i32_0 : i32, i32, i32
  }
  func.func @transform_2(%arg0: i32, %arg1: i32) -> (i32, i32, i32) {
    %c0_i32 = arith.constant 0 : i32
    %c0_i32_0 = arith.constant 0 : i32
    return %arg0, %arg1, %c0_i32 : i32, i32, i32
  }
}

</mosaic_0001>

<llo_original>
// kernel: tpu_custom_call.1
$region0: #{tpu_custom_call.1}
  #allocation0 [shape = 'u32[]', space=smem, size = 0x4, offset = 0x4, fixed_abs, tag = 'smem constant byte address 0x4 - core index']
  #allocation1 [shape = 'u32[72,128]{1,0:T(1,128)}', space=vmem, size = 0x9000, scoped, tag = 'internal scratch']
  %s0 = inlined_call_operand.hbm [shape: f32[2,64,128], index: 0, kind: input, shape index: {}]
  %s1 = inlined_call_operand.hbm [shape: f32[2,1,128], index: 1, kind: input, shape index: {}]
  %s2 = inlined_call_operand.hbm [shape: f32[2,64,128], index: 2, kind: output, shape index: {}]
  %s3 = sld [smem:[#allocation0]]
  $region49: #{tpu_custom_call.1} parent=0
    _
  %s5 = ssub.s32 1, %s3
  %s6 = scalar_select 0, %s5, %s3
  $region1: #{tpu_custom_call.1} parent=0
    #allocation2 [shape = 'u8[65536]{0}', space=vmem, size = 0x10000, scoped, tag = 'input window, operand 0']
    #allocation3 [shape = 's32[2]{0}', space=sflag, size = 0x8, scoped, tag = 'scoped memory for tpu_custom_call.1']
    #allocation4 [shape = 's32[2]{0}', space=sflag, size = 0x8, scoped, tag = 'scoped memory for tpu_custom_call.1']
    #allocation5 [shape = 'u8[1024]{0}', space=vmem, size = 0x400, scoped, tag = 'input window, operand 1']
    #allocation6 [shape = 's32[2]{0}', space=sflag, size = 0x8, scoped, tag = 'scoped memory for tpu_custom_call.1']
    #allocation7 [shape = 'u8[65536]{0}', space=vmem, size = 0x10000, scoped, tag = 'output window, operand 0']
    %7 = vsyncpa [#allocation3], 0
    %s8 = scalar_lea.sflag [#allocation3], 1
    %9 = vsyncpa %s8, 0
    %10 = vsyncpa [#allocation6], 0
    %s11 = scalar_lea.sflag [#allocation6], 1
    %12 = vsyncpa %s11, 0
    %13 = vsyncpa [#allocation4], 0
    %s14 = scalar_lea.sflag [#allocation4], 1
    %15 = vsyncpa %s14, 0
    loop: start=0, step=1, limit=4
    $region2: #{tpu_custom_call.1} parent=1 // loop_pre_header
      _
    $region3: #{tpu_custom_call.1} parent=1 // loop_header
      %s17 = sphi 0, %s21
      %p18 = scmp.ge.s32.totalorder %s17, 4
      %s24 = sphi 0, %s36
      %s25 = sphi 0, %s32
      %s26 = sphi 0, %s24
      %s27 = sphi 0, %s25
      %s28 = sphi 0, %s26
      %s29 = sphi 0, %s27
      %s41 = sphi 0, %s43
      %s44 = sphi 0, %s41
      %s45 = sphi 0, %s44
      %s61 = sphi 0, %s45
      %s67 = sphi 0, %s69
      %s70 = sphi 0, %s67
      %s71 = sphi 0, %s70
      %s87 = sphi 0, %s71
      %s95 = sphi 0, %s97
      %s98 = sphi 0, %s95
      %s99 = sphi 0, %s98
      %s115 = sphi 0, %s99
    $region4: #{tpu_custom_call.1} parent=1 // loop_header_branch
      %20 = sbr.rel (%p18) target = $region8
    $region5: #{tpu_custom_call.1} parent=1 // loop_body
      %s22 = ssub.s32 %s17, 1
      %s23 = ssub.s32 %s17, 2
      %s30 = sadd.s32 1, %s25
      %p31 = scmp.ge.s32.totalorder %s30, 1
      %s32 = scalar_select %p31, 0, %s30
      %s33 = sadd.s32 1, %s24
      %s34 = scalar_select %p31, %s33, %s24
      %p35 = scmp.ge.s32.totalorder %s34, 2
      %s36 = scalar_select %p35, 0, %s34
      %s37 = ssub.s32 %s24, %s36
      %s38 = ssub.s32 %s25, %s32
      %s39 = sor.u32 %s37, %s38
      %p40 = scmp.eq.s32.totalorder %s39, 0
      %s42 = sadd.s32 %s41, 1
      %s43 = scalar_select %p40, %s41, %s42
      %p46 = pneg %p40
      %p47 = scmp.eq.s32.totalorder %s17, 1
      %p48 = por %p46, %p47
      %p49 = scmp.ne.s32.totalorder %s41, %s44
      %p50 = scmp.eq.s32.totalorder %s17, 0
      %p51 = por %p49, %p50
      %p52 = scmp.ne.s32.totalorder %s41, %s44
      %p53 = scmp.eq.s32.totalorder %s22, 1
      %p54 = por %p52, %p53
      %p55 = scmp.ne.s32.totalorder %s44, %s45
      %p56 = scmp.eq.s32.totalorder %s22, 0
      %p57 = por %p55, %p56
      %p58 = scmp.ne.s32.totalorder %s44, %s45
      %p59 = scmp.eq.s32.totalorder %s23, 1
      %p60 = por %p58, %p59
      %p62 = scmp.ne.s32.totalorder %s45, %s61
      %p63 = scmp.eq.s32.totalorder %s23, 0
      %p64 = por %p62, %p63
      %s65 = ssub.s32 %s24, %s36
      %p66 = scmp.eq.s32.totalorder %s65, 0
      %s68 = sadd.s32 %s67, 1
      %s69 = scalar_select %p66, %s67, %s68
      %p72 = pneg %p66
      %p73 = scmp.eq.s32.totalorder %s17, 1
      %p74 = por %p72, %p73
      %p75 = scmp.ne.s32.totalorder %s67, %s70
      %p76 = scmp.eq.s32.totalorder %s17, 0
      %p77 = por %p75, %p76
      %p78 = scmp.ne.s32.totalorder %s67, %s70
      %p79 = scmp.eq.s32.totalorder %s22, 1
      %p80 = por %p78, %p79
      %p81 = scmp.ne.s32.totalorder %s70, %s71
      %p82 = scmp.eq.s32.totalorder %s22, 0
      %p83 = por %p81, %p82
      %p84 = scmp.ne.s32.totalorder %s70, %s71
      %p85 = scmp.eq.s32.totalorder %s23, 1
      %p86 = por %p84, %p85
      %p88 = scmp.ne.s32.totalorder %s71, %s87
      %p89 = scmp.eq.s32.totalorder %s23, 0
      %p90 = por %p88, %p89
      %s91 = ssub.s32 %s24, %s36
      %s92 = ssub.s32 %s25, %s32
      %s93 = sor.u32 %s91, %s92
      %p94 = scmp.eq.s32.totalorder %s93, 0
      %s96 = sadd.s32 %s95, 1
      %s97 = scalar_select %p94, %s95, %s96
      %p100 = pneg %p94
      %p101 = scmp.eq.s32.totalorder %s17, 1
      %p102 = por %p100, %p101
      %p103 = scmp.ne.s32.totalorder %s95, %s98
      %p104 = scmp.eq.s32.totalorder %s17, 0
      %p105 = por %p103, %p104
      %p106 = scmp.ne.s32.totalorder %s95, %s98
      %p107 = scmp.eq.s32.totalorder %s22, 1
      %p108 = por %p106, %p107
      %p109 = scmp.ne.s32.totalorder %s98, %s99
      %p110 = scmp.eq.s32.totalorder %s22, 0
      %p111 = por %p109, %p110
      %p112 = scmp.ne.s32.totalorder %s98, %s99
      %p113 = scmp.eq.s32.totalorder %s23, 1
      %p114 = por %p112, %p113
      %p116 = scmp.ne.s32.totalorder %s99, %s115
      %p117 = scmp.eq.s32.totalorder %s23, 0
      %p118 = por %p116, %p117
      %p119 = scmp.le.s32.totalorder 1, %s17
      %p120 = scmp.lt.s32.totalorder %s17, 3
      %p121 = pnand %p119, %p120
      %p122 = pneg %p121
      // Predicated region
      $region9: #{tpu_custom_call.1} parent=5 // pred_check
        _
      $region10: #{tpu_custom_call.1} parent=5 // pred_check_branch
        %124 = sbr.rel (%p121) target = $region12
      $region11: #{tpu_custom_call.1} parent=5 // pred_region
        %s125 = ssub.s32 %s17, 1
      $region12: #{tpu_custom_call.1} parent=5 // pred_fallthru
        _
      %p126 = scmp.lt.s32.totalorder %s17, 2
      // Predicated region
      $region13: #{tpu_custom_call.1} parent=5 // pred_check
        %p127 = pneg %p126
      $region14: #{tpu_custom_call.1} parent=5 // pred_check_branch
        %129 = sbr.rel (%p127) target = $region16
      $region15: #{tpu_custom_call.1} parent=5 // pred_region
        // Predicated region
        $region17: #{tpu_custom_call.1} parent=15 // pred_check
          %p130 = pneg %p51
        $region18: #{tpu_custom_call.1} parent=15 // pred_check_branch
          %132 = sbr.rel (%p130) target = $region20
        $region19: #{tpu_custom_call.1} parent=15 // pred_region
          %s133 = sand.u32 %s41, 1
          %s134 = scalar_lea.sflag [#allocation3], %s133
          %s135 = sand.u32 %s41, 1
          %s136 = smul.addr %s135, 64
          %s137 = scalar_lea.vmem [#allocation2], %s136
          %s138 = smul.u32 8, %s25
          %140 = vsyncadd %s134, 0
          %s141 = smul.addr %s24, 8
          %s142 = sadd.s32 %s138, %s141
          %s143 = smul.addr %s142, 8
          %s144 = scalar_lea.hbm %s0, %s143
          %s145 = sshll.u32 %s144, 4
          %s146 = int_to_ptr.hbm [resolvable:$true] %s145
          %s147 = sshll.u32 %s137, 4
          %s148 = int_to_ptr.vmem [resolvable:$true] %s147
          %153 = dma.hbm_to_vmem [thread:$0]  %s146, 1024, %s148, %s134, 128, 128, 8
        $region20: #{tpu_custom_call.1} parent=15 // pred_fallthru
          _
        // Predicated region
        $region21: #{tpu_custom_call.1} parent=15 // pred_check
          %p154 = pneg %p77
        $region22: #{tpu_custom_call.1} parent=15 // pred_check_branch
          %156 = sbr.rel (%p154) target = $region24
        $region23: #{tpu_custom_call.1} parent=15 // pred_region
          %s157 = sand.u32 %s67, 1
          %s158 = scalar_lea.sflag [#allocation6], %s157
          %s159 = sand.u32 %s67, 1
          %s160 = scalar_lea.vmem [#allocation5], %s159
          %162 = vsyncadd %s158, 0
          %s163 = scalar_lea.hbm %s1, %s24
          %s165 = sshll.u32 %s163, 4
          %s166 = int_to_ptr.hbm [resolvable:$true] %s165
          %s167 = sshll.u32 %s160, 4
          %s168 = int_to_ptr.vmem [resolvable:$true] %s167
          %170 = dma.hbm_to_vmem [thread:$0]  %s166, 16, %s168, %s158
        $region24: #{tpu_custom_call.1} parent=15 // pred_fallthru
          _
      $region16: #{tpu_custom_call.1} parent=5 // pred_fallthru
        _
      %p171 = scmp.le.s32.totalorder 1, %s17
      %p172 = scmp.lt.s32.totalorder %s17, 3
      %p173 = pnand %p171, %p172
      %p174 = pneg %p173
      // Predicated region
      $region25: #{tpu_custom_call.1} parent=5 // pred_check
        _
      $region26: #{tpu_custom_call.1} parent=5 // pred_check_branch
        %176 = sbr.rel (%p173) target = $region28
      $region27: #{tpu_custom_call.1} parent=5 // pred_region
        %s177 = ssub.s32 %s17, 1
        %s178 = sand.u32 %s44, 1
        %s179 = scalar_lea.sflag [#allocation3], %s178
        %s180 = sand.u32 %s44, 1
        %s181 = smul.addr %s180, 64
        %s182 = scalar_lea.vmem [#allocation2], %s181
        // Predicated region
        $region29: #{tpu_custom_call.1} parent=27 // pred_check
          %p183 = pneg %p57
        $region30: #{tpu_custom_call.1} parent=27 // pred_check_branch
          %185 = sbr.rel (%p183) target = $region32
        $region31: #{tpu_custom_call.1} parent=27 // pred_region
          %187 = dma.done %s179, 1024
        $region32: #{tpu_custom_call.1} parent=27 // pred_fallthru
          _
        %s188 = sand.u32 %s70, 1
        %s189 = scalar_lea.sflag [#allocation6], %s188
        %s190 = sand.u32 %s70, 1
        %s191 = scalar_lea.vmem [#allocation5], %s190
        // Predicated region
        $region33: #{tpu_custom_call.1} parent=27 // pred_check
          %p192 = pneg %p83
        $region34: #{tpu_custom_call.1} parent=27 // pred_check_branch
          %194 = sbr.rel (%p192) target = $region36
        $region35: #{tpu_custom_call.1} parent=27 // pred_region
          %196 = dma.done %s189, 16
        $region36: #{tpu_custom_call.1} parent=27 // pred_fallthru
          _
        %s197 = sand.u32 %s44, 1
        %s198 = scalar_lea.sflag [#allocation3], %s197
        %s199 = sand.u32 %s44, 1
        %s200 = smul.addr %s199, 64
        %s201 = scalar_lea.vmem [#allocation2], %s200
        %p202 = pneg %p57
        %p203 = pneg %p54
        %s204 = sand.u32 %s70, 1
        %s205 = scalar_lea.sflag [#allocation6], %s204
        %s206 = sand.u32 %s70, 1
        %s207 = scalar_lea.vmem [#allocation5], %s206
        %p208 = pneg %p83
        %p209 = pneg %p80
        %p210 = pneg %p111
        %p211 = pneg %p108
        %s212 = sand.u32 %s98, 1
        %s213 = scalar_lea.sflag [#allocation4], %s212
        %s214 = sand.u32 %s98, 1
        %s215 = smul.addr %s214, 64
        %s216 = scalar_lea.vmem [#allocation7], %s215
        %s217 = smul.u32 8, %s27
        %s218 = smul.u32 8, %s27
        %v219 = vld [vmem:[%s182] sm:$0xff]
        %v220 = vld [vmem:[%s182 + $0x8] sm:$0xff]
        %v221 = vld [vmem:[%s182 + $0x10] sm:$0xff]
        %v222 = vld [vmem:[%s182 + $0x18] sm:$0xff]
        %v223 = vld [vmem:[%s182 + $0x20] sm:$0xff]
        %v224 = vld [vmem:[%s182 + $0x28] sm:$0xff]
        %v225 = vld [vmem:[%s182 + $0x30] sm:$0xff]
        %v226 = vld [vmem:[%s182 + $0x38] sm:$0xff]
        %v227 = vld [vmem:[%s191] sm:$0x1]
        %v229 = vperm.slane %v227, 0
        %v231 = vadd.f32 %v219, %v229
        %v232 = vadd.f32 %v220, %v229
        %v233 = vadd.f32 %v221, %v229
        %v234 = vadd.f32 %v222, %v229
        %v235 = vadd.f32 %v223, %v229
        %v236 = vadd.f32 %v224, %v229
        %v237 = vadd.f32 %v225, %v229
        %v238 = vadd.f32 %v226, %v229
        %v239 = vmul.f32 %v231, 1.442695
        %v240 = vpow.pop %v239
        %v241 = vmul.f32 %v232, 1.442695
        %v242 = vpow.pop %v241
        %v243 = vmul.f32 %v233, 1.442695
        %v244 = vpow.pop %v243
        %v245 = vmul.f32 %v234, 1.442695
        %v246 = vpow.pop %v245
        %v247 = vmul.f32 %v235, 1.442695
        %v248 = vpow.pop %v247
        %v249 = vmul.f32 %v236, 1.442695
        %v250 = vpow.pop %v249
        %v251 = vmul.f32 %v237, 1.442695
        %v252 = vpow.pop %v251
        %v253 = vmul.f32 %v238, 1.442695
        %v254 = vpow.pop %v253
        %255 = vst [vmem:[%s216] sm:$0xff] %v240
        %256 = vst [vmem:[%s216 + $0x8] sm:$0xff] %v242
        %257 = vst [vmem:[%s216 + $0x10] sm:$0xff] %v244
        %258 = vst [vmem:[%s216 + $0x18] sm:$0xff] %v246
        %259 = vst [vmem:[%s216 + $0x20] sm:$0xff] %v248
        %260 = vst [vmem:[%s216 + $0x28] sm:$0xff] %v250
        %261 = vst [vmem:[%s216 + $0x30] sm:$0xff] %v252
        %262 = vst [vmem:[%s216 + $0x38] sm:$0xff] %v254
        %s263 = sand.u32 %s98, 1
        %s264 = scalar_lea.sflag [#allocation4], %s263
        %s265 = sand.u32 %s98, 1
        %s266 = smul.addr %s265, 64
        %s267 = scalar_lea.vmem [#allocation7], %s266
        // Predicated region
        $region37: #{tpu_custom_call.1} parent=27 // pred_check
          %p268 = pneg %p108
        $region38: #{tpu_custom_call.1} parent=27 // pred_check_branch
          %270 = sbr.rel (%p268) target = $region40
        $region39: #{tpu_custom_call.1} parent=27 // pred_region
          %s271 = smul.u32 8, %s27
          %273 = vsyncadd %s264, 0
          %s274 = smul.addr %s26, 8
          %s275 = sadd.s32 %s271, %s274
          %s276 = smul.addr %s275, 8
          %s277 = scalar_lea.hbm %s2, %s276
          %s278 = sshll.u32 %s267, 4
          %s279 = int_to_ptr.vmem [resolvable:$true] %s278
          %s280 = sshll.u32 %s277, 4
          %s281 = int_to_ptr.hbm [resolvable:$true] %s280
          %286 = dma.vmem_to_hbm [thread:$0]  %s279, 1024, %s281, %s264, 128, 128, 8
        $region40: #{tpu_custom_call.1} parent=27 // pred_fallthru
          _
      $region28: #{tpu_custom_call.1} parent=5 // pred_fallthru
        _
      %p287 = scmp.le.s32.totalorder 2, %s17
      // Predicated region
      $region41: #{tpu_custom_call.1} parent=5 // pred_check
        %p288 = pneg %p287
      $region42: #{tpu_custom_call.1} parent=5 // pred_check_branch
        %290 = sbr.rel (%p288) target = $region44
      $region43: #{tpu_custom_call.1} parent=5 // pred_region
        %s291 = ssub.s32 %s17, 2
        // Predicated region
        $region45: #{tpu_custom_call.1} parent=43 // pred_check
          %p292 = pneg %p114
        $region46: #{tpu_custom_call.1} parent=43 // pred_check_branch
          %294 = sbr.rel (%p292) target = $region48
        $region47: #{tpu_custom_call.1} parent=43 // pred_region
          %s295 = sand.u32 %s99, 1
          %s296 = scalar_lea.sflag [#allocation4], %s295
          %s297 = sand.u32 %s99, 1
          %s298 = smul.addr %s297, 64
          %s299 = scalar_lea.vmem [#allocation7], %s298
          %301 = dma.done %s296, 1024
        $region48: #{tpu_custom_call.1} parent=43 // pred_fallthru
          _
      $region44: #{tpu_custom_call.1} parent=5 // pred_fallthru
        _
    $region6: #{tpu_custom_call.1} parent=1 // loop_footer
      %s21 = sadd.s32 1, %s17
    $region7: #{tpu_custom_call.1} parent=1 // loop_footer_branch
      %16 = sbr.rel target = $region3
    $region8: #{tpu_custom_call.1} parent=1 // loop_exit
      _
    %302 = vsyncpa [#allocation3], 1
    %s303 = scalar_lea.sflag [#allocation3], 1
    %304 = vsyncpa %s303, 1
    %305 = vsyncpa [#allocation6], 1
    %s306 = scalar_lea.sflag [#allocation6], 1
    %307 = vsyncpa %s306, 1
    %308 = vsyncpa [#allocation4], 1
    %s309 = scalar_lea.sflag [#allocation4], 1
    %310 = vsyncpa %s309, 1

</llo_original>
